<compile_context>
chip_gen: v7x
topology: tpu7x:2x2x1
jax: 0.10.0
libtpu: 0.0.40
codegen_flags: <defaults>
</compile_context>

<pallas_src>
import jax
import jax.numpy as jnp
from jax.experimental import pallas as pl
from jax.experimental.pallas import tpu as pltpu

IN_FEATURES = 10
OUT_FEATURES = 1

# Per-grid-step overhead ~0.35us; 131072-lane blocks (~8 MiB in VMEM after sublane padding
# 10->16, ~16 MiB double-buffered) amortize it to <5% while staying well under VMEM on
# v5e/v6e/v7x once the scoped limit is raised below.
MAX_TILE_B = 131072


def _cdiv(a, b):
    return (a + b - 1) // b


def _round_up(x, m):
    return _cdiv(x, m) * m


def _linear_kernel(w_ref, b_ref, xT_ref, o_ref):
    # w_ref : VMEM (10, 1)   lane-broadcast weight column
    # b_ref : SMEM (1,)      bias scalar
    # xT_ref: VMEM (10, TILE_B)  batch on the 128-lane axis (dense vld / dense vst)
    # o_ref : VMEM (1, TILE_B)
    # Full-sublane-occupancy broadcast multiply (VPU) + feature-axis reduce (XLU slot);
    # no cross-lane (batch-axis) mixing, so ragged-block garbage lanes stay isolated.
    o_ref[...] = (
        jnp.sum(xT_ref[...] * w_ref[...], axis=0, keepdims=True) + b_ref[0]
    ).astype(o_ref.dtype)


def linear_feature_major(xT, weight, bias):
    """Core entry. xT: (10, B) f32 feature-major; weight: (1, 10); bias: (1,) -> (1, B)."""
    _, B = xT.shape

    # Lane-aligned batch tile; aim for >=2 grid steps so v7x's 2 TensorCores both work.
    tile_b = min(MAX_TILE_B, _round_up(max(_cdiv(B, 2), 1), 128))
    grid_b = _cdiv(B, tile_b)  # ragged last block; OOB output lanes are masked/discarded

    w_col = weight.reshape(IN_FEATURES, 1).astype(jnp.float32)  # (10, 1) -> VMEM column
    b_vec = bias.reshape(OUT_FEATURES).astype(jnp.float32)      # (1,)    -> SMEM scalar

    cost = pl.CostEstimate(
        flops=2 * IN_FEATURES * B,
        transcendentals=0,
        bytes_accessed=4 * (IN_FEATURES * B + OUT_FEATURES * B
                            + IN_FEATURES + OUT_FEATURES),
    )

    return pl.pallas_call(
        _linear_kernel,
        out_shape=jax.ShapeDtypeStruct((OUT_FEATURES, B), xT.dtype),
        grid=(grid_b,),
        in_specs=[
            pl.BlockSpec((IN_FEATURES, 1), lambda i: (0, 0)),        # weight column (resident)
            pl.BlockSpec(memory_space=pltpu.MemorySpace.SMEM),       # bias (1,)
            pl.BlockSpec((IN_FEATURES, tile_b), lambda i: (0, i)),   # xT tile, lane-dense
        ],
        out_specs=pl.BlockSpec((OUT_FEATURES, tile_b), lambda i: (0, i)),
        compiler_params=pltpu.CompilerParams(
            dimension_semantics=("parallel",),     # shards batch tiles over 2 TCs on v7x
            vmem_limit_bytes=48 << 20,             # v5e's 16 MiB scoped default would trip
        ),
        cost_estimate=cost,
    )(w_col, b_vec, xT)


def simple_model_forward(x, weight, bias):
    """PyTorch-layout entry: x (B, 10) f32, weight (1, 10), bias (1,) -> (B, 1) f32."""
    # TODO(synk): x.T is one extra HBM read+write pass; supply feature-major x upstream
    # (call linear_feature_major directly) to remove it.
    out_T = linear_feature_major(x.T, weight, bias)        # (1, B)
    return out_T.reshape(x.shape[0], OUT_FEATURES)         # free reshape, no transpose op


if __name__ == "__main__":
    key = jax.random.PRNGKey(0)
    kx, kw, kb = jax.random.split(key, 3)

    B = 8  # small batch
    x = jax.random.normal(kx, (B, IN_FEATURES), dtype=jnp.float32)

    # Deterministic parameter init (mimicking nn.Linear's uniform(-1/sqrt(fan_in), +...))
    bound = 1.0 / (IN_FEATURES ** 0.5)
    weight = jax.random.uniform(
        kw, (OUT_FEATURES, IN_FEATURES), dtype=jnp.float32, minval=-bound, maxval=bound
    )
    bias = jax.random.uniform(
        kb, (OUT_FEATURES,), dtype=jnp.float32, minval=-bound, maxval=bound
    )

    out = simple_model_forward(x, weight, bias)
    out = jax.block_until_ready(out)

    # Reference check against plain JAX
    ref = x @ weight.T + bias
    assert out.shape == (B, OUT_FEATURES)
    assert jnp.allclose(out, ref, atol=1e-5, rtol=1e-5)

    print("KERNEL_OK")
</pallas_src>

<mosaic_0001>
module attributes {stable_mosaic.version = 11 : i64} {
  func.func @_linear_kernel(%arg0: i32, %arg1: memref<10x1xf32, #tpu.memory_space<vmem>>, %arg2: memref<1xf32, #tpu.memory_space<smem>>, %arg3: memref<10x128xf32, #tpu.memory_space<vmem>>, %arg4: memref<1x128xf32, #tpu.memory_space<vmem>>) attributes {dimension_semantics = [#tpu.dimension_semantics<parallel>], iteration_bounds = array<i64: 1>, scalar_prefetch = 0 : i64, scratch_operands = 0 : i64, tpu.core_type = #tpu.core_type<tc>, window_params = [{pipeline_mode = #tpu.pipeline_mode<synchronous>, transform_indices = @transform_0, window_bounds = array<i64: 10, 1>}, {transform_indices = @transform_1, window_bounds = array<i64: 1>}, {transform_indices = @transform_2, window_bounds = array<i64: 10, 128>}, {transform_indices = @transform_3, window_bounds = array<i64: 1, 128>}]} {
    %c0 = arith.constant 0 : index
    %c0_0 = arith.constant 0 : index
    %0 = vector.load %arg3[%c0, %c0_0] : memref<10x128xf32, #tpu.memory_space<vmem>>, vector<10x128xf32>
    %c0_1 = arith.constant 0 : index
    %c0_2 = arith.constant 0 : index
    %1 = vector.load %arg1[%c0_1, %c0_2] : memref<10x1xf32, #tpu.memory_space<vmem>>, vector<10x1xf32>
    %2 = vector.broadcast %1 : vector<10x1xf32> to vector<10x128xf32>
    %3 = arith.mulf %0, %2 : vector<10x128xf32>
    %cst = arith.constant dense<0.000000e+00> : vector<128xf32>
    %4 = vector.multi_reduction <add>, %3, %cst [0] : vector<10x128xf32> to vector<128xf32>
    %5 = vector.shape_cast %4 : vector<128xf32> to vector<1x128xf32>
    %c0_3 = arith.constant 0 : index
    %6 = memref.load %arg2[%c0_3] : memref<1xf32, #tpu.memory_space<smem>>
    %7 = vector.broadcast %6 : f32 to vector<1x128xf32>
    %8 = arith.addf %5, %7 : vector<1x128xf32>
    %c0_4 = arith.constant 0 : index
    %c0_5 = arith.constant 0 : index
    %9 = vector.load %arg4[%c0_4, %c0_5] : memref<1x128xf32, #tpu.memory_space<vmem>>, vector<1x128xf32>
    tpu.vector_store %arg4[%c0_4, %c0_5], %8 {strides = array<i32>} : memref<1x128xf32, #tpu.memory_space<vmem>>, vector<1x128xf32>,
    return
  }
  func.func @transform_0(%arg0: i32) -> (i32, i32) {
    %c0_i32 = arith.constant 0 : i32
    %c0_i32_0 = arith.constant 0 : i32
    %c0_i32_1 = arith.constant 0 : i32
    return %c0_i32, %c0_i32_0 : i32, i32
  }
  func.func @transform_1(%arg0: i32) -> i32 {
    %c0_i32 = arith.constant 0 : i32
    %c0_i32_0 = arith.constant 0 : i32
    return %c0_i32 : i32
  }
  func.func @transform_2(%arg0: i32) -> (i32, i32) {
    %c0_i32 = arith.constant 0 : i32
    %c0_i32_0 = arith.constant 0 : i32
    return %c0_i32, %arg0 : i32, i32
  }
  func.func @transform_3(%arg0: i32) -> (i32, i32) {
    %c0_i32 = arith.constant 0 : i32
    %c0_i32_0 = arith.constant 0 : i32
    return %c0_i32, %arg0 : i32, i32
  }
}

</mosaic_0001>

<llo_original>
// kernel: tpu_custom_call.1
$region0: #{tpu_custom_call.1}
  #allocation0 [shape = 'u32[]', space=smem, size = 0x4, offset = 0x4, fixed_abs, tag = 'smem constant byte address 0x4 - core index']
  #allocation1 [shape = 'u32[144,128]{1,0:T(1,128)}', space=vmem, size = 0x12000, scoped, tag = 'internal scratch']
  #allocation2 [shape = 'f32[1]{0:T(128)S(6)}', space=smem, size = 0x200, scoped, tag = 'scoped memory for tpu_custom_call.1']
  %s0 = inlined_call_operand.vmem [shape: f32[10,1], index: 0, kind: input, shape index: {}]
  %s1 = inlined_call_operand.<no memory space> [shape: f32[1], index: 1, kind: input, shape index: {}]
  %s2 = inlined_call_operand.vmem [shape: f32[10,8], index: 2, kind: input, shape index: {}]
  %s3 = inlined_call_operand.hbm [shape: f32[1,8], index: 3, kind: output, shape index: {}]
  %s4 = sld [smem:[#allocation0]]
  $region22: #{tpu_custom_call.1} parent=0
    _
  %s6 = ssub.s32 1, %s4
  %s7 = scalar_select 0, %s6, %s4
  %8 = sst [smem:[#allocation2]] %s1
  $region1: #{tpu_custom_call.1} parent=0
    #allocation3 [shape = 'u8[512]{0}', space=vmem, size = 0x400, scoped, tag = 'output window, operand 0, single buffered']
    #allocation4 [shape = 's32[1]{0}', space=sflag, size = 0x4, scoped, tag = 'scoped memory for tpu_custom_call.1']
    %9 = vsyncpa [#allocation4], 0
    // Predicated region
    $region2: #{tpu_custom_call.1} parent=1 // pred_check
      _
    $region3: #{tpu_custom_call.1} parent=1 // pred_check_branch
      %11 = sbr.rel (0) target = $region5
    $region4: #{tpu_custom_call.1} parent=1 // pred_region
      _
    $region5: #{tpu_custom_call.1} parent=1 // pred_fallthru
      _
    // Predicated region
    $region6: #{tpu_custom_call.1} parent=1 // pred_check
      _
    $region7: #{tpu_custom_call.1} parent=1 // pred_check_branch
      %13 = sbr.rel (0) target = $region9
    $region8: #{tpu_custom_call.1} parent=1 // pred_region
      _
    $region9: #{tpu_custom_call.1} parent=1 // pred_fallthru
      _
    // Predicated region
    $region10: #{tpu_custom_call.1} parent=1 // pred_check
      _
    $region11: #{tpu_custom_call.1} parent=1 // pred_check_branch
      %15 = sbr.rel (0) target = $region13
    $region12: #{tpu_custom_call.1} parent=1 // pred_region
      _
    $region13: #{tpu_custom_call.1} parent=1 // pred_fallthru
      _
    %v16 = vld [vmem:[%s2] sm:$0xff]
    %v17 = vld [vmem:[%s2 + $0x8] sm:$0x3]
    %v18 = vld [vmem:[%s0] sm:$0xff]
    %v19 = vld [vmem:[%s0 + $0x8] sm:$0x3]
    %21 = vset.pattern.permute.xlu0 0
    %22 = vperm.xlu0 %21, %v18
    %v23 = vpop.permute.xlu0 %22
    %26 = vset.pattern.permute.xlu0 0
    %27 = vperm.xlu0 %26, %v19
    %v28 = vpop.permute.xlu0 %27
    %v30 = vmul.f32 %v16, %v23
    %v31 = vmul.f32 %v17, %v28
    %vm32 = vcmask 1041408
    %v33 = vsel %vm32, %v31, 0.0
    %v34 = vadd.f32 %v30, %v33
    %v35 = vrot.slane %v34, 4
    %v36 = vadd.f32 %v34, %v35
    %v37 = vrot.slane %v36, 2
    %v38 = vadd.f32 %v36, %v37
    %v39 = vrot.slane %v38, 1
    %v40 = vadd.f32 %v38, %v39
    %s41 = sld [smem:[#allocation2]]
    %v42 = vstv %s41
    %v43 = vadd.f32 %v40, %v42
    %44 = vst [vmem:[#allocation3] sm:$0x1] %v43
    // Predicated region
    $region14: #{tpu_custom_call.1} parent=1 // pred_check
      _
    $region15: #{tpu_custom_call.1} parent=1 // pred_check_branch
      %46 = sbr.rel (0) target = $region17
    $region16: #{tpu_custom_call.1} parent=1 // pred_region
      %s48 = ssub.s32 16, 16
      %49 = vsyncadd [#allocation4], %s48
      %s51 = sshll.u32 [#allocation3], 4
      %s52 = int_to_ptr.vmem [resolvable:$true] %s51
      %54 = dma.vmem_to_hbm [thread:$0]  %s52, 16, %s3, [#allocation4]
    $region17: #{tpu_custom_call.1} parent=1 // pred_fallthru
      _
    // Predicated region
    $region18: #{tpu_custom_call.1} parent=1 // pred_check
      _
    $region19: #{tpu_custom_call.1} parent=1 // pred_check_branch
      %56 = sbr.rel (0) target = $region21
    $region20: #{tpu_custom_call.1} parent=1 // pred_region
      %57 = dma.done [#allocation4], 16
    $region21: #{tpu_custom_call.1} parent=1 // pred_fallthru
      _
    %58 = vsyncpa [#allocation4], 1

</llo_original>
